<compile_context>
chip_gen: v7x
topology: tpu7x:2x2x1
jax: 0.10.0
libtpu: 0.0.40
codegen_flags: <defaults>
</compile_context>

<pallas_src>
import functools

import jax
import jax.numpy as jnp
from jax import lax
from jax.experimental import pallas as pl
from jax.experimental.pallas import tpu as pltpu


def _round_up(v, m):
    return ((v + m - 1) // m) * m


def _vmem_capacity_bytes():
    """Per-TensorCore VMEM capacity; conservative 64 MiB fallback if unknown."""
    try:
        info = pltpu.get_tpu_info()
        cap = int(getattr(info, "vmem_capacity_bytes", 0))
        if cap > 0:
            return cap
    except Exception:
        pass
    return 64 << 20


def _groupnorm_kernel(x_ref, g_ref, b_ref, o_ref, *, eps, inv_s):
    # x_ref/o_ref: (block_rows, S) tile.  g_ref/b_ref: (block_rows, 1) per-step tiles.
    x = x_ref[...].astype(jnp.float32)

    # Single fused traversal: sum and sum-of-squares together.
    s1 = jnp.sum(x, axis=-1, keepdims=True)
    s2 = jnp.sum(x * x, axis=-1, keepdims=True)
    mean = s1 * inv_s
    # Population variance via E[x^2] - mean^2; clamp guards fp cancellation and
    # garbage in padded tail rows (those rows are masked out of the store anyway).
    var = jnp.maximum(s2 * inv_s - mean * mean, 0.0)
    inv = lax.rsqrt(var + eps)

    gamma = g_ref[...]                       # (block_rows, 1)
    beta = b_ref[...]
    scale = inv * gamma                      # per-row scalar combine (cheap)
    shift = beta - mean * scale
    o_ref[...] = (x * scale + shift).astype(o_ref.dtype)


def group_norm(x, weight, bias, *, num_groups, eps=1e-5, block_rows=None):
    """x: (N, C, H, W) NCHW array. weight/bias: (C,). Returns (N, C, H, W)."""
    N, C, H, W = x.shape
    assert C % num_groups == 0, "channels must be divisible by num_groups"
    S = H * W
    NC = N * C
    itemsize = jnp.dtype(x.dtype).itemsize
    sublane = max(8, 32 // max(itemsize, 1))         # 8 f32 / 16 bf16 / 32 8-bit

    # TODO(synk): when S is not a multiple of 128 (e.g. 8x8 latents, S=64) the
    # stores are masked partial-lane; a lane-dense repack (k=128//S rows per
    # lane row with a segmented lane reduction, or an (S-on-sublane,
    # NC-on-lane) transposed variant) would recover ~2-4x there.
    # TODO(synk): for extremely large S (>=~64k f32) a second 'arbitrary' grid
    # axis over S with sum/sum^2 scratch accumulators would be needed.

    cap = _vmem_capacity_bytes()
    two_tc = cap <= (64 << 20)               # v7x-class: 64 MiB VMEM, 2 TCs/chip
    if two_tc:
        budget = min(int(0.75 * cap), 48 << 20)
        limit_cap = 52 << 20
    else:                                    # v5e / v6e: 128 MiB VMEM, 1 TC
        budget = min(int(0.75 * cap), 96 << 20)
        limit_cap = 100 << 20

    # Live VMEM per row: double-buffered in+out tiles (native dtype) + ~2
    # full-width f32 body temporaries + the lane-padded (block_rows,1) affine
    # tiles (2 arrays x 2 buffers x 128 lanes x 4 B = 2 KiB/row, S-independent).
    per_row_bytes = S * (4 * itemsize + 2 * 4) + 2048

    if block_rows is None:
        br = max(sublane, (budget // per_row_bytes) // sublane * sublane)
        if two_tc and NC > sublane:
            # Keep >=2 grid steps so both TensorCores get work.
            br = min(br, _round_up(-(-NC // 2), sublane))
        br = min(br, _round_up(NC, sublane))
        # Prefer an even number of grid steps on 2-TC parts (balanced split).
        g_rows = pl.cdiv(NC, br)
        if two_tc and g_rows > 1 and g_rows % 2 == 1:
            br2 = _round_up(-(-NC // (g_rows + 1)), sublane)
            if br2 >= sublane and pl.cdiv(NC, br2) % 2 == 0:
                br = br2
        block_rows = br
    assert block_rows % sublane == 0, "block_rows must match sublane packing"

    grid_rows = pl.cdiv(NC, block_rows)

    # Flatten to the 2-D layout; expand per-channel affine to per-row (f32).
    # Partial tail blocks are handled by Pallas' masked block DMAs; no padding.
    xr = x.reshape(NC, S)
    g = jnp.broadcast_to(weight[None, :].astype(jnp.float32), (N, C)).reshape(NC, 1)
    b = jnp.broadcast_to(bias[None, :].astype(jnp.float32), (N, C)).reshape(NC, 1)

    est_bytes = block_rows * per_row_bytes
    vmem_limit = int(min(limit_cap, max(32 << 20, est_bytes + (8 << 20))))

    cost = pl.CostEstimate(
        flops=6 * NC * S,
        transcendentals=NC,                               # one rsqrt per row
        bytes_accessed=2 * NC * S * itemsize + 2 * NC * 4,
    )

    out = pl.pallas_call(
        functools.partial(_groupnorm_kernel, eps=eps, inv_s=1.0 / S),
        out_shape=jax.ShapeDtypeStruct((NC, S), x.dtype),
        grid_spec=pltpu.PrefetchScalarGridSpec(
            num_scalar_prefetch=0,
            grid=(grid_rows,),
            in_specs=[
                pl.BlockSpec((block_rows, S), lambda i: (i, 0)),
                pl.BlockSpec((block_rows, 1), lambda i: (i, 0)),   # gamma, per-step
                pl.BlockSpec((block_rows, 1), lambda i: (i, 0)),   # beta, per-step
            ],
            out_specs=pl.BlockSpec((block_rows, S), lambda i: (i, 0)),
        ),
        compiler_params=pltpu.CompilerParams(
            dimension_semantics=("parallel",),
            vmem_limit_bytes=vmem_limit,
        ),
        cost_estimate=cost,
    )(xr, g, b)
    return out.reshape(N, C, H, W)


def _reference_group_norm(x, weight, bias, num_groups, eps=1e-5):
    """Pure-JAX transcription of the PyTorch forward (for verification)."""
    N, C, H, W = x.shape
    xg = x.reshape(N, num_groups, C // num_groups, H, W)
    mean = xg.mean(axis=(3, 4), keepdims=True)
    var = ((xg - mean) ** 2).mean(axis=(3, 4), keepdims=True)
    xn = ((xg - mean) / jnp.sqrt(var + eps)).reshape(N, C, H, W)
    return xn * weight[None, :, None, None] + bias[None, :, None, None]


if __name__ == "__main__":
    key = jax.random.PRNGKey(0)
    k1, k2, k3, k4 = jax.random.split(key, 4)
    eps = 1e-5

    # Case 1: module-default init (weight=1, bias=0), N=2, C=4, H=W=16, groups=2.
    N, C, H, W, G = 2, 4, 16, 16, 2
    x = jax.random.normal(k1, (N, C, H, W), dtype=jnp.float32)
    weight = jnp.ones((C,), dtype=jnp.float32)
    bias = jnp.zeros((C,), dtype=jnp.float32)
    out = jax.block_until_ready(group_norm(x, weight, bias, num_groups=G, eps=eps))
    ref = _reference_group_norm(x, weight, bias, G, eps)
    assert out.shape == (N, C, H, W)
    assert jnp.allclose(out, ref, atol=1e-5, rtol=1e-4), "case 1 mismatch vs reference"

    # Case 2: non-trivial affine + multi-step grid with a partial tail block
    # (NC=12, block_rows=8 -> grid=2) to exercise the per-step affine blocks and
    # masked tail handling.
    N2, C2, H2, W2, G2 = 3, 4, 8, 16, 4
    x2 = jax.random.normal(k2, (N2, C2, H2, W2), dtype=jnp.float32)
    w2 = jax.random.normal(k3, (C2,), dtype=jnp.float32)
    b2 = jax.random.normal(k4, (C2,), dtype=jnp.float32)
    out2 = jax.block_until_ready(
        group_norm(x2, w2, b2, num_groups=G2, eps=eps, block_rows=8))
    ref2 = _reference_group_norm(x2, w2, b2, G2, eps)
    assert jnp.allclose(out2, ref2, atol=1e-5, rtol=1e-4), "case 2 mismatch vs reference"

    print("KERNEL_OK")
</pallas_src>

<mosaic_0001>
module attributes {stable_mosaic.version = 11 : i64} {
  func.func @_groupnorm_kernel(%arg0: i32, %arg1: memref<8x256xf32, #tpu.memory_space<vmem>>, %arg2: memref<8x1xf32, #tpu.memory_space<vmem>>, %arg3: memref<8x1xf32, #tpu.memory_space<vmem>>, %arg4: memref<8x256xf32, #tpu.memory_space<vmem>>) attributes {dimension_semantics = [#tpu.dimension_semantics<parallel>], iteration_bounds = array<i64: 1>, scalar_prefetch = 0 : i64, scratch_operands = 0 : i64, tpu.core_type = #tpu.core_type<tc>, window_params = [{transform_indices = @transform_0, window_bounds = array<i64: 8, 256>}, {transform_indices = @transform_1, window_bounds = array<i64: 8, 1>}, {transform_indices = @transform_2, window_bounds = array<i64: 8, 1>}, {transform_indices = @transform_3, window_bounds = array<i64: 8, 256>}]} {
    %c0 = arith.constant 0 : index
    %c0_0 = arith.constant 0 : index
    %0 = vector.load %arg1[%c0, %c0_0] : memref<8x256xf32, #tpu.memory_space<vmem>>, vector<8x256xf32>
    %cst = arith.constant dense<0.000000e+00> : vector<8xf32>
    %1 = vector.multi_reduction <add>, %0, %cst [1] : vector<8x256xf32> to vector<8xf32>
    %2 = vector.shape_cast %1 : vector<8xf32> to vector<8x1xf32>
    %3 = arith.mulf %0, %0 : vector<8x256xf32>
    %cst_1 = arith.constant dense<0.000000e+00> : vector<8xf32>
    %4 = vector.multi_reduction <add>, %3, %cst_1 [1] : vector<8x256xf32> to vector<8xf32>
    %5 = vector.shape_cast %4 : vector<8xf32> to vector<8x1xf32>
    %cst_2 = arith.constant 3.906250e-03 : f32
    %6 = vector.broadcast %cst_2 : f32 to vector<8x1xf32>
    %7 = arith.mulf %2, %6 : vector<8x1xf32>
    %cst_3 = arith.constant 3.906250e-03 : f32
    %8 = vector.broadcast %cst_3 : f32 to vector<8x1xf32>
    %9 = arith.mulf %5, %8 : vector<8x1xf32>
    %10 = arith.mulf %7, %7 : vector<8x1xf32>
    %11 = arith.subf %9, %10 : vector<8x1xf32>
    %cst_4 = arith.constant 0.000000e+00 : f32
    %12 = vector.broadcast %cst_4 : f32 to vector<8x1xf32>
    %13 = arith.maximumf %11, %12 : vector<8x1xf32>
    %cst_5 = arith.constant 9.99999974E-6 : f32
    %14 = vector.broadcast %cst_5 : f32 to vector<8x1xf32>
    %15 = arith.addf %13, %14 : vector<8x1xf32>
    %16 = math.rsqrt %15 : vector<8x1xf32>
    %c0_6 = arith.constant 0 : index
    %c0_7 = arith.constant 0 : index
    %17 = vector.load %arg2[%c0_6, %c0_7] : memref<8x1xf32, #tpu.memory_space<vmem>>, vector<8x1xf32>
    %c0_8 = arith.constant 0 : index
    %c0_9 = arith.constant 0 : index
    %18 = vector.load %arg3[%c0_8, %c0_9] : memref<8x1xf32, #tpu.memory_space<vmem>>, vector<8x1xf32>
    %19 = arith.mulf %16, %17 : vector<8x1xf32>
    %20 = arith.mulf %7, %19 : vector<8x1xf32>
    %21 = arith.subf %18, %20 : vector<8x1xf32>
    %22 = vector.broadcast %19 : vector<8x1xf32> to vector<8x256xf32>
    %23 = arith.mulf %0, %22 : vector<8x256xf32>
    %24 = vector.broadcast %21 : vector<8x1xf32> to vector<8x256xf32>
    %25 = arith.addf %23, %24 : vector<8x256xf32>
    %c0_10 = arith.constant 0 : index
    %c0_11 = arith.constant 0 : index
    %26 = vector.load %arg4[%c0_10, %c0_11] : memref<8x256xf32, #tpu.memory_space<vmem>>, vector<8x256xf32>
    tpu.vector_store %arg4[%c0_10, %c0_11], %25 {strides = array<i32>} : memref<8x256xf32, #tpu.memory_space<vmem>>, vector<8x256xf32>,
    return
  }
  func.func @transform_0(%arg0: i32) -> (i32, i32) {
    %c0_i32 = arith.constant 0 : i32
    %c0_i32_0 = arith.constant 0 : i32
    return %arg0, %c0_i32 : i32, i32
  }
  func.func @transform_1(%arg0: i32) -> (i32, i32) {
    %c0_i32 = arith.constant 0 : i32
    %c0_i32_0 = arith.constant 0 : i32
    return %arg0, %c0_i32 : i32, i32
  }
  func.func @transform_2(%arg0: i32) -> (i32, i32) {
    %c0_i32 = arith.constant 0 : i32
    %c0_i32_0 = arith.constant 0 : i32
    return %arg0, %c0_i32 : i32, i32
  }
  func.func @transform_3(%arg0: i32) -> (i32, i32) {
    %c0_i32 = arith.constant 0 : i32
    %c0_i32_0 = arith.constant 0 : i32
    return %arg0, %c0_i32 : i32, i32
  }
}

</mosaic_0001>

<llo_original>
// kernel: tpu_custom_call.1
$region0: #{tpu_custom_call.1}
  #allocation0 [shape = 'u32[]', space=smem, size = 0x4, offset = 0x4, fixed_abs, tag = 'smem constant byte address 0x4 - core index']
  #allocation1 [shape = 'u32[144,128]{1,0:T(1,128)}', space=vmem, size = 0x12000, scoped, tag = 'internal scratch']
  %s0 = inlined_call_operand.vmem [shape: f32[8,256], index: 0, kind: input, shape index: {}]
  %s1 = inlined_call_operand.vmem [shape: f32[8,1], index: 1, kind: input, shape index: {}]
  %s2 = inlined_call_operand.vmem [shape: f32[8,1], index: 2, kind: input, shape index: {}]
  %s3 = inlined_call_operand.hbm [shape: f32[8,256], index: 3, kind: output, shape index: {}]
  %s4 = sld [smem:[#allocation0]]
  $region22: #{tpu_custom_call.1} parent=0
    _
  %s6 = ssub.s32 1, %s4
  %s7 = scalar_select 0, %s6, %s4
  $region1: #{tpu_custom_call.1} parent=0
    #allocation2 [shape = 'u8[8192]{0}', space=vmem, size = 0x2000, scoped, tag = 'output window, operand 0, single buffered']
    #allocation3 [shape = 's32[1]{0}', space=sflag, size = 0x4, scoped, tag = 'scoped memory for tpu_custom_call.1']
    %8 = vsyncpa [#allocation3], 0
    // Predicated region
    $region2: #{tpu_custom_call.1} parent=1 // pred_check
      _
    $region3: #{tpu_custom_call.1} parent=1 // pred_check_branch
      %10 = sbr.rel (0) target = $region5
    $region4: #{tpu_custom_call.1} parent=1 // pred_region
      _
    $region5: #{tpu_custom_call.1} parent=1 // pred_fallthru
      _
    // Predicated region
    $region6: #{tpu_custom_call.1} parent=1 // pred_check
      _
    $region7: #{tpu_custom_call.1} parent=1 // pred_check_branch
      %12 = sbr.rel (0) target = $region9
    $region8: #{tpu_custom_call.1} parent=1 // pred_region
      _
    $region9: #{tpu_custom_call.1} parent=1 // pred_fallthru
      _
    // Predicated region
    $region10: #{tpu_custom_call.1} parent=1 // pred_check
      _
    $region11: #{tpu_custom_call.1} parent=1 // pred_check_branch
      %14 = sbr.rel (0) target = $region13
    $region12: #{tpu_custom_call.1} parent=1 // pred_region
      _
    $region13: #{tpu_custom_call.1} parent=1 // pred_fallthru
      _
    %v15 = vld [vmem:[%s0] sm:$0xff]
    %v16 = vld [vmem:[%s0 + $0x8] sm:$0xff]
    %v17 = vadd.f32 %v15, %v16
    %18 = vadd.xlane.f32.xlu0 %v17
    %v19 = vpop.xlane.xlu0 %18
    %v20 = vmul.f32 %v15, %v15
    %v21 = vmul.f32 %v16, %v16
    %v22 = vadd.f32 %v20, %v21
    %23 = vadd.xlane.f32.xlu0 %v22
    %v24 = vpop.xlane.xlu0 %23
    %v25 = vmul.f32 %v19, 0.00390625
    %v26 = vmul.f32 %v24, 0.00390625
    %v27 = vmul.f32 %v25, %v25
    %v28 = vsub.f32 %v26, %v27
    %v29 = vmax.f32 %v28, 0.0
    %v30 = vadd.f32 %v29, 1e-05
    %v31 = vrsqrt.pop %v30
    %v32 = vld [vmem:[%s1] sm:$0xff]
    %v33 = vld [vmem:[%s2] sm:$0xff]
    %v34 = vmul.f32 %v31, %v32
    %v35 = vmul.f32 %v25, %v34
    %v36 = vsub.f32 %v33, %v35
    %38 = vset.pattern.permute.xlu0 0
    %39 = vperm.xlu0 %38, %v34
    %v40 = vpop.permute.xlu0 %39
    %v42 = vmul.f32 %v15, %v40
    %v43 = vmul.f32 %v16, %v40
    %45 = vset.pattern.permute.xlu0 0
    %46 = vperm.xlu0 %45, %v36
    %v47 = vpop.permute.xlu0 %46
    %v49 = vadd.f32 %v42, %v47
    %v50 = vadd.f32 %v43, %v47
    %51 = vst [vmem:[#allocation2] sm:$0xff] %v49
    %52 = vst [vmem:[#allocation2 + $0x8] sm:$0xff] %v50
    // Predicated region
    $region14: #{tpu_custom_call.1} parent=1 // pred_check
      _
    $region15: #{tpu_custom_call.1} parent=1 // pred_check_branch
      %54 = sbr.rel (0) target = $region17
    $region16: #{tpu_custom_call.1} parent=1 // pred_region
      %s56 = ssub.s32 256, 256
      %57 = vsyncadd [#allocation3], %s56
      %s59 = sshll.u32 [#allocation2], 4
      %s60 = int_to_ptr.vmem [resolvable:$true] %s59
      %62 = dma.vmem_to_hbm [thread:$0]  %s60, 256, %s3, [#allocation3]
    $region17: #{tpu_custom_call.1} parent=1 // pred_fallthru
      _
    // Predicated region
    $region18: #{tpu_custom_call.1} parent=1 // pred_check
      _
    $region19: #{tpu_custom_call.1} parent=1 // pred_check_branch
      %64 = sbr.rel (0) target = $region21
    $region20: #{tpu_custom_call.1} parent=1 // pred_region
      %65 = dma.done [#allocation3], 256
    $region21: #{tpu_custom_call.1} parent=1 // pred_fallthru
      _
    %66 = vsyncpa [#allocation3], 1

</llo_original>
